<compile_context>
chip_gen: v7x
topology: tpu7x:2x2x1
jax: 0.10.0
libtpu: 0.0.40
codegen_flags: <defaults>
</compile_context>

<pallas_src>
import jax
import jax.numpy as jnp
from jax.experimental import pallas as pl
from jax.experimental.pallas import tpu as pltpu


# ----------------------------------------------------------------------------- kernel
def _bit_estimator_kernel(x_ref, p_ref, o_ref):
    # x_ref: (row_tile, col_tile)   p_ref: (row_tile, 11)
    # p columns: [sp_h1, b1, th_a1, sp_h2, b2, th_a2, sp_h3, b3, th_a3, sp_h4, b4]
    x = x_ref[...]

    def bitparm(v, k):
        c = 3 * k
        y = v * p_ref[:, c:c + 1] + p_ref[:, c + 1:c + 2]
        return y + jnp.tanh(y) * p_ref[:, c + 2:c + 3]

    x = bitparm(x, 0)
    x = bitparm(x, 1)
    x = bitparm(x, 2)
    o_ref[...] = jax.nn.sigmoid(x * p_ref[:, 9:10] + p_ref[:, 10:11]).astype(o_ref.dtype)


# ----------------------------------------------------------------------------- tiling
def _tile_options(total, unit):
    """All multiples of `unit` that divide `total` (ascending); total % unit == 0."""
    n = total // unit
    return [d * unit for d in range(1, n + 1) if n % d == 0]


def _pick_tiles(rows, cols, x_itemsize, out_itemsize, vmem_budget_bytes):
    """Pick (row_tile, col_tile) for a padded (rows, cols) slab.

    rows % 8 == 0 and cols % 128 == 0 are guaranteed by the wrapper padding,
    so every candidate tile divides the slab exactly (balanced grid, no tails).
    """

    def footprint(rt, ct):
        # x block + out block, each double-buffered by the auto-pipeline,
        # plus the f32 param block whose 11-wide lane dim pads to 128.
        return 2 * rt * ct * (x_itemsize + out_itemsize) + 2 * rt * 128 * 4

    row_opts = _tile_options(rows, 8)
    col_opts = _tile_options(cols, 128)

    # Largest lane-dense column tile whose minimum-row footprint fits the budget.
    col_fit = [c for c in col_opts if footprint(row_opts[0], c) <= vmem_budget_bytes]
    col_tile = col_fit[-1] if col_fit else col_opts[0]
    # Largest row tile that fits together with that column tile.
    row_fit = [r for r in row_opts if footprint(r, col_tile) <= vmem_budget_bytes]
    row_tile = row_fit[-1] if row_fit else row_opts[0]

    # Megacore (v7x has 2 TensorCores): for small grids force an even number of
    # steps so both cores get balanced work.  Prefer splitting rows (the outer
    # axis) so the param block stays resident across the inner column steps.
    def nsteps(rt, ct):
        return (rows // rt) * (cols // ct)

    total = nsteps(row_tile, col_tile)
    if total < 8 and total % 2 != 0:
        even_rows = [r for r in (row_fit or [row_tile]) if nsteps(r, col_tile) % 2 == 0]
        if even_rows:
            row_tile = even_rows[-1]
        else:
            even_cols = [c for c in col_opts
                         if footprint(row_tile, c) <= vmem_budget_bytes
                         and nsteps(row_tile, c) % 2 == 0]
            if even_cols:
                col_tile = even_cols[-1]
            # else: the slab is a single minimal (8, 128) tile; one step is fine.
    return row_tile, col_tile


# ----------------------------------------------------------------------------- wrapper
def multi_head_bit_estimator(x, params, *, vmem_budget_bytes=36 << 20,
                             vmem_limit_bytes=48 << 20, out_dtype=None):
    """x: (G, B, C, H, W). params: dict of (G, 1, C, 1, 1) arrays h/b/a 1..4 (no a4)."""
    G, B, C, H, W = x.shape
    rows, cols = G * B * C, H * W
    out_dtype = x.dtype if out_dtype is None else jnp.dtype(out_dtype)

    # Zero-copy flatten: (G,B,C,H,W) is already contiguous in (g*b*c, h*w) order.
    x2d = x.reshape(rows, cols)

    # Per-row params (value depends only on (g, c)); broadcast over B is tiny.
    def prow(p):
        return jnp.broadcast_to(p.reshape(G, 1, C), (G, B, C)).reshape(rows)

    packed = jnp.stack(
        [
            jax.nn.softplus(prow(params["h1"])), prow(params["b1"]), jnp.tanh(prow(params["a1"])),
            jax.nn.softplus(prow(params["h2"])), prow(params["b2"]), jnp.tanh(prow(params["a2"])),
            jax.nn.softplus(prow(params["h3"])), prow(params["b3"]), jnp.tanh(prow(params["a3"])),
            jax.nn.softplus(prow(params["h4"])), prow(params["b4"]),
        ],
        axis=1,
    ).astype(jnp.float32)  # (rows, 11)

    # Pad sublane axis to a multiple of 8 and lane axis to a multiple of 128 so
    # every block is legally tileable and all output stores stay lane-dense.
    prows = max(8, ((rows + 7) // 8) * 8)
    pcols = max(128, ((cols + 127) // 128) * 128)
    if (prows, pcols) != (rows, cols):
        x2d = jnp.pad(x2d, ((0, prows - rows), (0, pcols - cols)))
    if prows != rows:
        packed = jnp.pad(packed, ((0, prows - rows), (0, 0)))

    row_tile, col_tile = _pick_tiles(prows, pcols, x2d.dtype.itemsize,
                                     out_dtype.itemsize, vmem_budget_bytes)
    grid = (prows // row_tile, pcols // col_tile)

    out2d = pl.pallas_call(
        _bit_estimator_kernel,
        out_shape=jax.ShapeDtypeStruct((prows, pcols), out_dtype),
        grid_spec=pltpu.PrefetchScalarGridSpec(
            num_scalar_prefetch=0,
            grid=grid,
            in_specs=[
                pl.BlockSpec((row_tile, col_tile), lambda i, j: (i, j)),
                # Param block depends only on i -> stays resident across inner j.
                pl.BlockSpec((row_tile, 11), lambda i, j: (i, 0)),
            ],
            out_specs=pl.BlockSpec((row_tile, col_tile), lambda i, j: (i, j)),
        ),
        compiler_params=pltpu.CompilerParams(
            dimension_semantics=("parallel", "parallel"),
            vmem_limit_bytes=vmem_limit_bytes,
        ),
    )(x2d, packed)

    if (prows, pcols) != (rows, cols):
        out2d = out2d[:rows, :cols]

    # Zero-copy unflatten back to the module's layout (copy only if padded).
    return out2d.reshape(G, B, C, H, W)

    # TODO(synk): a further (low-priority) variant could grid over (g, c) and
    # feed the 11 params as SMEM scalars instead of a lane-padded VMEM block.


# ----------------------------------------------------------------------------- pure-JAX reference
def _reference(x, params):
    def bitparm(x, h, b, a):
        y = x * jax.nn.softplus(h) + b
        return y + jnp.tanh(y) * jnp.tanh(a)

    x = bitparm(x, params["h1"], params["b1"], params["a1"])
    x = bitparm(x, params["h2"], params["b2"], params["a2"])
    x = bitparm(x, params["h3"], params["b3"], params["a3"])
    return jax.nn.sigmoid(x * jax.nn.softplus(params["h4"]) + params["b4"])


# ----------------------------------------------------------------------------- main
if __name__ == "__main__":
    # small, deterministic setup (bitparm_init_mode='normal', range=0.01)
    G = 4      # nb_head
    C = 4      # channel
    B = 2      # batch
    H = W = 16

    key = jax.random.PRNGKey(0)
    keys = jax.random.split(key, 12)

    init_range = 0.01
    pshape = (G, 1, C, 1, 1)
    params = {
        "h1": jax.random.normal(keys[0], pshape, jnp.float32) * init_range,
        "b1": jax.random.normal(keys[1], pshape, jnp.float32) * init_range,
        "a1": jax.random.normal(keys[2], pshape, jnp.float32) * init_range,
        "h2": jax.random.normal(keys[3], pshape, jnp.float32) * init_range,
        "b2": jax.random.normal(keys[4], pshape, jnp.float32) * init_range,
        "a2": jax.random.normal(keys[5], pshape, jnp.float32) * init_range,
        "h3": jax.random.normal(keys[6], pshape, jnp.float32) * init_range,
        "b3": jax.random.normal(keys[7], pshape, jnp.float32) * init_range,
        "a3": jax.random.normal(keys[8], pshape, jnp.float32) * init_range,
        "h4": jax.random.normal(keys[9], pshape, jnp.float32) * init_range,
        "b4": jax.random.normal(keys[10], pshape, jnp.float32) * init_range,
    }

    x = jax.random.normal(keys[11], (G, B, C, H, W), jnp.float32)

    out = multi_head_bit_estimator(x, params)
    out = jax.block_until_ready(out)

    ref = _reference(x, params)
    assert out.shape == (G, B, C, H, W)
    # Slightly relaxed tolerance: EUP tanh/sigmoid and the wrapper-side
    # precomputed softplus/tanh can differ from XLA's fused lowering by ~1e-6.
    max_err = float(jnp.max(jnp.abs(out - ref)))
    assert jnp.allclose(out, ref, atol=5e-6, rtol=1e-5), f"mismatch vs reference (max abs err {max_err})"

    print("KERNEL_OK")
</pallas_src>

<mosaic_0001>
module attributes {stable_mosaic.version = 11 : i64} {
  func.func @_bit_estimator_kernel(%arg0: i32, %arg1: i32, %arg2: memref<16x256xf32, #tpu.memory_space<vmem>>, %arg3: memref<16x11xf32, #tpu.memory_space<vmem>>, %arg4: memref<16x256xf32, #tpu.memory_space<vmem>>) attributes {dimension_semantics = [#tpu.dimension_semantics<parallel>, #tpu.dimension_semantics<parallel>], iteration_bounds = array<i64: 2, 1>, scalar_prefetch = 0 : i64, scratch_operands = 0 : i64, tpu.core_type = #tpu.core_type<tc>, window_params = [{transform_indices = @transform_0, window_bounds = array<i64: 16, 256>}, {transform_indices = @transform_1, window_bounds = array<i64: 16, 11>}, {transform_indices = @transform_2, window_bounds = array<i64: 16, 256>}]} {
    %c0 = arith.constant 0 : index
    %c0_0 = arith.constant 0 : index
    %0 = vector.load %arg2[%c0, %c0_0] : memref<16x256xf32, #tpu.memory_space<vmem>>, vector<16x256xf32>
    %c0_1 = arith.constant 0 : index
    %c0_2 = arith.constant 0 : index
    %1 = vector.load %arg3[%c0_1, %c0_2] : memref<16x11xf32, #tpu.memory_space<vmem>>, vector<16x1xf32>
    %2 = vector.broadcast %1 : vector<16x1xf32> to vector<16x256xf32>
    %3 = arith.mulf %0, %2 : vector<16x256xf32>
    %c0_3 = arith.constant 0 : index
    %c1 = arith.constant 1 : index
    %4 = vector.load %arg3[%c0_3, %c1] : memref<16x11xf32, #tpu.memory_space<vmem>>, vector<16x1xf32>
    %5 = vector.broadcast %4 : vector<16x1xf32> to vector<16x256xf32>
    %6 = arith.addf %3, %5 : vector<16x256xf32>
    %7 = math.tanh %6 : vector<16x256xf32>
    %c0_4 = arith.constant 0 : index
    %c2 = arith.constant 2 : index
    %8 = vector.load %arg3[%c0_4, %c2] : memref<16x11xf32, #tpu.memory_space<vmem>>, vector<16x1xf32>
    %9 = vector.broadcast %8 : vector<16x1xf32> to vector<16x256xf32>
    %10 = arith.mulf %7, %9 : vector<16x256xf32>
    %11 = arith.addf %6, %10 : vector<16x256xf32>
    %c0_5 = arith.constant 0 : index
    %c3 = arith.constant 3 : index
    %12 = vector.load %arg3[%c0_5, %c3] : memref<16x11xf32, #tpu.memory_space<vmem>>, vector<16x1xf32>
    %13 = vector.broadcast %12 : vector<16x1xf32> to vector<16x256xf32>
    %14 = arith.mulf %11, %13 : vector<16x256xf32>
    %c0_6 = arith.constant 0 : index
    %c4 = arith.constant 4 : index
    %15 = vector.load %arg3[%c0_6, %c4] : memref<16x11xf32, #tpu.memory_space<vmem>>, vector<16x1xf32>
    %16 = vector.broadcast %15 : vector<16x1xf32> to vector<16x256xf32>
    %17 = arith.addf %14, %16 : vector<16x256xf32>
    %18 = math.tanh %17 : vector<16x256xf32>
    %c0_7 = arith.constant 0 : index
    %c5 = arith.constant 5 : index
    %19 = vector.load %arg3[%c0_7, %c5] : memref<16x11xf32, #tpu.memory_space<vmem>>, vector<16x1xf32>
    %20 = vector.broadcast %19 : vector<16x1xf32> to vector<16x256xf32>
    %21 = arith.mulf %18, %20 : vector<16x256xf32>
    %22 = arith.addf %17, %21 : vector<16x256xf32>
    %c0_8 = arith.constant 0 : index
    %c6 = arith.constant 6 : index
    %23 = vector.load %arg3[%c0_8, %c6] : memref<16x11xf32, #tpu.memory_space<vmem>>, vector<16x1xf32>
    %24 = vector.broadcast %23 : vector<16x1xf32> to vector<16x256xf32>
    %25 = arith.mulf %22, %24 : vector<16x256xf32>
    %c0_9 = arith.constant 0 : index
    %c7 = arith.constant 7 : index
    %26 = vector.load %arg3[%c0_9, %c7] : memref<16x11xf32, #tpu.memory_space<vmem>>, vector<16x1xf32>
    %27 = vector.broadcast %26 : vector<16x1xf32> to vector<16x256xf32>
    %28 = arith.addf %25, %27 : vector<16x256xf32>
    %29 = math.tanh %28 : vector<16x256xf32>
    %c0_10 = arith.constant 0 : index
    %c8 = arith.constant 8 : index
    %30 = vector.load %arg3[%c0_10, %c8] : memref<16x11xf32, #tpu.memory_space<vmem>>, vector<16x1xf32>
    %31 = vector.broadcast %30 : vector<16x1xf32> to vector<16x256xf32>
    %32 = arith.mulf %29, %31 : vector<16x256xf32>
    %33 = arith.addf %28, %32 : vector<16x256xf32>
    %c0_11 = arith.constant 0 : index
    %c9 = arith.constant 9 : index
    %34 = vector.load %arg3[%c0_11, %c9] : memref<16x11xf32, #tpu.memory_space<vmem>>, vector<16x1xf32>
    %35 = vector.broadcast %34 : vector<16x1xf32> to vector<16x256xf32>
    %36 = arith.mulf %33, %35 : vector<16x256xf32>
    %c0_12 = arith.constant 0 : index
    %c10 = arith.constant 10 : index
    %37 = vector.load %arg3[%c0_12, %c10] : memref<16x11xf32, #tpu.memory_space<vmem>>, vector<16x1xf32>
    %38 = vector.broadcast %37 : vector<16x1xf32> to vector<16x256xf32>
    %39 = arith.addf %36, %38 : vector<16x256xf32>
    %40 = arith.negf %39 : vector<16x256xf32>
    %41 = math.exp %40 : vector<16x256xf32>
    %cst = arith.constant 1.000000e+00 : f32
    %42 = vector.broadcast %cst : f32 to vector<16x256xf32>
    %43 = arith.addf %42, %41 : vector<16x256xf32>
    %44 = arith.divf %42, %43 : vector<16x256xf32>
    %c0_13 = arith.constant 0 : index
    %c0_14 = arith.constant 0 : index
    %45 = vector.load %arg4[%c0_13, %c0_14] : memref<16x256xf32, #tpu.memory_space<vmem>>, vector<16x256xf32>
    tpu.vector_store %arg4[%c0_13, %c0_14], %44 {strides = array<i32>} : memref<16x256xf32, #tpu.memory_space<vmem>>, vector<16x256xf32>,
    return
  }
  func.func @transform_0(%arg0: i32, %arg1: i32) -> (i32, i32) {
    %c0_i32 = arith.constant 0 : i32
    return %arg0, %arg1 : i32, i32
  }
  func.func @transform_1(%arg0: i32, %arg1: i32) -> (i32, i32) {
    %c0_i32 = arith.constant 0 : i32
    %c0_i32_0 = arith.constant 0 : i32
    return %arg0, %c0_i32 : i32, i32
  }
  func.func @transform_2(%arg0: i32, %arg1: i32) -> (i32, i32) {
    %c0_i32 = arith.constant 0 : i32
    return %arg0, %arg1 : i32, i32
  }
}

</mosaic_0001>

<llo_original>
// kernel: tpu_custom_call.1
$region0: #{tpu_custom_call.1}
  #allocation0 [shape = 'u32[]', space=smem, size = 0x4, offset = 0x4, fixed_abs, tag = 'smem constant byte address 0x4 - core index']
  #allocation1 [shape = 'u32[144,128]{1,0:T(1,128)}', space=vmem, size = 0x12000, scoped, tag = 'internal scratch']
  %s0 = inlined_call_operand.hbm [shape: f32[32,256], index: 0, kind: input, shape index: {}]
  %s1 = inlined_call_operand.vmem [shape: f32[32,11], index: 1, kind: input, shape index: {}]
  %s2 = inlined_call_operand.hbm [shape: f32[32,256], index: 2, kind: output, shape index: {}]
  %s3 = sld [smem:[#allocation0]]
  $region45: #{tpu_custom_call.1} parent=0
    _
  %s5 = ssub.s32 1, %s3
  %s6 = scalar_select 0, %s5, %s3
  $region1: #{tpu_custom_call.1} parent=0
    #allocation2 [shape = 'u8[32768]{0}', space=vmem, size = 0x8000, scoped, tag = 'input window, operand 0']
    #allocation3 [shape = 's32[2]{0}', space=sflag, size = 0x8, scoped, tag = 'scoped memory for tpu_custom_call.1']
    #allocation4 [shape = 's32[2]{0}', space=sflag, size = 0x8, scoped, tag = 'scoped memory for tpu_custom_call.1']
    #allocation5 [shape = 'u8[32768]{0}', space=vmem, size = 0x8000, scoped, tag = 'output window, operand 0']
    %7 = vsyncpa [#allocation3], 0
    %s8 = scalar_lea.sflag [#allocation3], 1
    %9 = vsyncpa %s8, 0
    %10 = vsyncpa [#allocation4], 0
    %s11 = scalar_lea.sflag [#allocation4], 1
    %12 = vsyncpa %s11, 0
    loop: start=0, step=1, limit=4
    $region2: #{tpu_custom_call.1} parent=1 // loop_pre_header
      _
    $region3: #{tpu_custom_call.1} parent=1 // loop_header
      %s14 = sphi 0, %s18
      %p15 = scmp.ge.s32.totalorder %s14, 4
      %s21 = sphi 0, %s33
      %s22 = sphi 0, %s29
      %s23 = sphi 0, %s21
      %s24 = sphi 0, %s22
      %s25 = sphi 0, %s23
      %s26 = sphi 0, %s24
      %s38 = sphi 0, %s40
      %s41 = sphi 0, %s38
      %s42 = sphi 0, %s41
      %s58 = sphi 0, %s42
      %s64 = sphi 0, %s66
      %s67 = sphi 0, %s64
      %s68 = sphi 0, %s67
      %s84 = sphi 0, %s68
      %s92 = sphi 0, %s94
      %s95 = sphi 0, %s92
      %s96 = sphi 0, %s95
      %s112 = sphi 0, %s96
    $region4: #{tpu_custom_call.1} parent=1 // loop_header_branch
      %17 = sbr.rel (%p15) target = $region8
    $region5: #{tpu_custom_call.1} parent=1 // loop_body
      %s19 = ssub.s32 %s14, 1
      %s20 = ssub.s32 %s14, 2
      %s27 = sadd.s32 1, %s22
      %p28 = scmp.ge.s32.totalorder %s27, 1
      %s29 = scalar_select %p28, 0, %s27
      %s30 = sadd.s32 1, %s21
      %s31 = scalar_select %p28, %s30, %s21
      %p32 = scmp.ge.s32.totalorder %s31, 2
      %s33 = scalar_select %p32, 0, %s31
      %s34 = ssub.s32 %s21, %s33
      %s35 = ssub.s32 %s22, %s29
      %s36 = sor.u32 %s34, %s35
      %p37 = scmp.eq.s32.totalorder %s36, 0
      %s39 = sadd.s32 %s38, 1
      %s40 = scalar_select %p37, %s38, %s39
      %p43 = pneg %p37
      %p44 = scmp.eq.s32.totalorder %s14, 1
      %p45 = por %p43, %p44
      %p46 = scmp.ne.s32.totalorder %s38, %s41
      %p47 = scmp.eq.s32.totalorder %s14, 0
      %p48 = por %p46, %p47
      %p49 = scmp.ne.s32.totalorder %s38, %s41
      %p50 = scmp.eq.s32.totalorder %s19, 1
      %p51 = por %p49, %p50
      %p52 = scmp.ne.s32.totalorder %s41, %s42
      %p53 = scmp.eq.s32.totalorder %s19, 0
      %p54 = por %p52, %p53
      %p55 = scmp.ne.s32.totalorder %s41, %s42
      %p56 = scmp.eq.s32.totalorder %s20, 1
      %p57 = por %p55, %p56
      %p59 = scmp.ne.s32.totalorder %s42, %s58
      %p60 = scmp.eq.s32.totalorder %s20, 0
      %p61 = por %p59, %p60
      %s62 = ssub.s32 %s21, %s33
      %p63 = scmp.eq.s32.totalorder %s62, 0
      %s65 = sadd.s32 %s64, 1
      %s66 = scalar_select %p63, %s64, %s65
      %p69 = pneg %p63
      %p70 = scmp.eq.s32.totalorder %s14, 1
      %p71 = por %p69, %p70
      %p72 = scmp.ne.s32.totalorder %s64, %s67
      %p73 = scmp.eq.s32.totalorder %s14, 0
      %p74 = por %p72, %p73
      %p75 = scmp.ne.s32.totalorder %s64, %s67
      %p76 = scmp.eq.s32.totalorder %s19, 1
      %p77 = por %p75, %p76
      %p78 = scmp.ne.s32.totalorder %s67, %s68
      %p79 = scmp.eq.s32.totalorder %s19, 0
      %p80 = por %p78, %p79
      %p81 = scmp.ne.s32.totalorder %s67, %s68
      %p82 = scmp.eq.s32.totalorder %s20, 1
      %p83 = por %p81, %p82
      %p85 = scmp.ne.s32.totalorder %s68, %s84
      %p86 = scmp.eq.s32.totalorder %s20, 0
      %p87 = por %p85, %p86
      %s88 = ssub.s32 %s21, %s33
      %s89 = ssub.s32 %s22, %s29
      %s90 = sor.u32 %s88, %s89
      %p91 = scmp.eq.s32.totalorder %s90, 0
      %s93 = sadd.s32 %s92, 1
      %s94 = scalar_select %p91, %s92, %s93
      %p97 = pneg %p91
      %p98 = scmp.eq.s32.totalorder %s14, 1
      %p99 = por %p97, %p98
      %p100 = scmp.ne.s32.totalorder %s92, %s95
      %p101 = scmp.eq.s32.totalorder %s14, 0
      %p102 = por %p100, %p101
      %p103 = scmp.ne.s32.totalorder %s92, %s95
      %p104 = scmp.eq.s32.totalorder %s19, 1
      %p105 = por %p103, %p104
      %p106 = scmp.ne.s32.totalorder %s95, %s96
      %p107 = scmp.eq.s32.totalorder %s19, 0
      %p108 = por %p106, %p107
      %p109 = scmp.ne.s32.totalorder %s95, %s96
      %p110 = scmp.eq.s32.totalorder %s20, 1
      %p111 = por %p109, %p110
      %p113 = scmp.ne.s32.totalorder %s96, %s112
      %p114 = scmp.eq.s32.totalorder %s20, 0
      %p115 = por %p113, %p114
      %p116 = scmp.le.s32.totalorder 1, %s14
      %p117 = scmp.lt.s32.totalorder %s14, 3
      %p118 = pnand %p116, %p117
      %p119 = pneg %p118
      // Predicated region
      $region9: #{tpu_custom_call.1} parent=5 // pred_check
        _
      $region10: #{tpu_custom_call.1} parent=5 // pred_check_branch
        %121 = sbr.rel (%p118) target = $region12
      $region11: #{tpu_custom_call.1} parent=5 // pred_region
        %s122 = ssub.s32 %s14, 1
      $region12: #{tpu_custom_call.1} parent=5 // pred_fallthru
        _
      %p123 = scmp.lt.s32.totalorder %s14, 2
      // Predicated region
      $region13: #{tpu_custom_call.1} parent=5 // pred_check
        %p124 = pneg %p123
      $region14: #{tpu_custom_call.1} parent=5 // pred_check_branch
        %126 = sbr.rel (%p124) target = $region16
      $region15: #{tpu_custom_call.1} parent=5 // pred_region
        // Predicated region
        $region17: #{tpu_custom_call.1} parent=15 // pred_check
          %p127 = pneg %p48
        $region18: #{tpu_custom_call.1} parent=15 // pred_check_branch
          %129 = sbr.rel (%p127) target = $region20
        $region19: #{tpu_custom_call.1} parent=15 // pred_region
          %s130 = sand.u32 %s38, 1
          %s131 = scalar_lea.sflag [#allocation3], %s130
          %s132 = sand.u32 %s38, 1
          %s133 = smul.addr %s132, 32
          %s134 = scalar_lea.vmem [#allocation2], %s133
          %s135 = smul.u32 2, %s21
          %s136 = smul.u32 2, %s22
          %s138 = ssub.s32 512, 512
          %139 = vsyncadd %s131, %s138
          %s140 = smul.addr %s135, 2
          %s141 = sadd.s32 %s136, %s140
          %s142 = smul.addr %s141, 128
          %s143 = scalar_lea.hbm %s0, %s142
          %s144 = sshll.u32 %s134, 4
          %s145 = int_to_ptr.vmem [resolvable:$true] %s144
          %150 = dma.hbm_to_vmem [thread:$0]  %s143, 512, %s145, %s131, 256, 256, 16
        $region20: #{tpu_custom_call.1} parent=15 // pred_fallthru
          _
        // Predicated region
        $region21: #{tpu_custom_call.1} parent=15 // pred_check
          %p151 = pneg %p74
        $region22: #{tpu_custom_call.1} parent=15 // pred_check_branch
          %153 = sbr.rel (%p151) target = $region24
        $region23: #{tpu_custom_call.1} parent=15 // pred_region
          %s154 = smul.u32 2, %s21
          %p155 = scmp.lt.s32.totalorder %s154, 3
          %s156 = scalar_select %p155, %s154, 3
          %s157 = smul.addr %s156, 8
          %s158 = scalar_lea.vmem %s1, %s157
          %s159 = smul.u32 2, %s21
        $region24: #{tpu_custom_call.1} parent=15 // pred_fallthru
          _
      $region16: #{tpu_custom_call.1} parent=5 // pred_fallthru
        _
      %p160 = scmp.le.s32.totalorder 1, %s14
      %p161 = scmp.lt.s32.totalorder %s14, 3
      %p162 = pnand %p160, %p161
      %p163 = pneg %p162
      // Predicated region
      $region25: #{tpu_custom_call.1} parent=5 // pred_check
        _
      $region26: #{tpu_custom_call.1} parent=5 // pred_check_branch
        %165 = sbr.rel (%p162) target = $region28
      $region27: #{tpu_custom_call.1} parent=5 // pred_region
        %s166 = ssub.s32 %s14, 1
        %s167 = sand.u32 %s41, 1
        %s168 = scalar_lea.sflag [#allocation3], %s167
        %s169 = sand.u32 %s41, 1
        %s170 = smul.addr %s169, 32
        %s171 = scalar_lea.vmem [#allocation2], %s170
        // Predicated region
        $region29: #{tpu_custom_call.1} parent=27 // pred_check
          %p172 = pneg %p54
        $region30: #{tpu_custom_call.1} parent=27 // pred_check_branch
          %174 = sbr.rel (%p172) target = $region32
        $region31: #{tpu_custom_call.1} parent=27 // pred_region
          %175 = dma.done %s168, 512
        $region32: #{tpu_custom_call.1} parent=27 // pred_fallthru
          _
        %s176 = sand.u32 %s41, 1
        %s177 = scalar_lea.sflag [#allocation3], %s176
        %s178 = sand.u32 %s41, 1
        %s179 = smul.addr %s178, 32
        %s180 = scalar_lea.vmem [#allocation2], %s179
        %p181 = pneg %p54
        %p182 = pneg %p51
        %s183 = smul.u32 2, %s23
        %p184 = scmp.lt.s32.totalorder %s183, 3
        %s185 = scalar_select %p184, %s183, 3
        %s186 = smul.addr %s185, 8
        %s187 = scalar_lea.vmem %s1, %s186
        %p188 = pneg %p80
        %p189 = pneg %p77
        %p190 = pneg %p108
        %p191 = pneg %p105
        %s192 = sand.u32 %s95, 1
        %s193 = scalar_lea.sflag [#allocation4], %s192
        %s194 = sand.u32 %s95, 1
        %s195 = smul.addr %s194, 32
        %s196 = scalar_lea.vmem [#allocation5], %s195
        %s197 = smul.u32 2, %s23
        %s198 = smul.u32 2, %s24
        %s199 = smul.u32 2, %s23
        %p200 = scmp.lt.s32.totalorder %s199, 3
        %s201 = scalar_select %p200, %s199, 3
        %s202 = smul.addr %s201, 8
        %s203 = scalar_lea.vmem %s1, %s202
        %s204 = smul.u32 2, %s23
        %s205 = smul.u32 2, %s23
        %s206 = smul.u32 2, %s24
        %v207 = vld [vmem:[%s171] sm:$0xff]
        %v208 = vld [vmem:[%s171 + $0x8] sm:$0xff]
        %v209 = vld [vmem:[%s171 + $0x10] sm:$0xff]
        %v210 = vld [vmem:[%s171 + $0x18] sm:$0xff]
        %v211 = vld [vmem:[%s203] sm:$0xff]
        %v212 = vld [vmem:[%s203 + $0x8] sm:$0xff]
        %214 = vset.pattern.permute.xlu0 0
        %215 = vperm.xlu0 %214, %v211
        %v216 = vpop.permute.xlu0 %215
        %219 = vset.pattern.permute.xlu0 0
        %220 = vperm.xlu0 %219, %v212
        %v221 = vpop.permute.xlu0 %220
        %v223 = vmul.f32 %v207, %v216
        %v224 = vmul.f32 %v208, %v216
        %v225 = vmul.f32 %v209, %v221
        %v226 = vmul.f32 %v210, %v221
        %227 = vset.pattern.permute.xlu0 1
        %228 = vperm.xlu0 %227, %v211
        %v229 = vpop.permute.xlu0 %228
        %231 = vset.pattern.permute.xlu0 1
        %232 = vperm.xlu0 %231, %v212
        %v233 = vpop.permute.xlu0 %232
        %v235 = vadd.f32 %v223, %v229
        %v236 = vadd.f32 %v224, %v229
        %v237 = vadd.f32 %v225, %v233
        %v238 = vadd.f32 %v226, %v233
        %v239 = vtanh.pop %v235
        %v240 = vtanh.pop %v236
        %v241 = vtanh.pop %v237
        %v242 = vtanh.pop %v238
        %243 = vset.pattern.permute.xlu0 2
        %244 = vperm.xlu0 %243, %v211
        %v245 = vpop.permute.xlu0 %244
        %247 = vset.pattern.permute.xlu0 2
        %248 = vperm.xlu0 %247, %v212
        %v249 = vpop.permute.xlu0 %248
        %v251 = vmul.f32 %v239, %v245
        %v252 = vmul.f32 %v240, %v245
        %v253 = vmul.f32 %v241, %v249
        %v254 = vmul.f32 %v242, %v249
        %v255 = vadd.f32 %v235, %v251
        %v256 = vadd.f32 %v236, %v252
        %v257 = vadd.f32 %v237, %v253
        %v258 = vadd.f32 %v238, %v254
        %259 = vset.pattern.permute.xlu0 3
        %260 = vperm.xlu0 %259, %v211
        %v261 = vpop.permute.xlu0 %260
        %263 = vset.pattern.permute.xlu0 3
        %264 = vperm.xlu0 %263, %v212
        %v265 = vpop.permute.xlu0 %264
        %v267 = vmul.f32 %v255, %v261
        %v268 = vmul.f32 %v256, %v261
        %v269 = vmul.f32 %v257, %v265
        %v270 = vmul.f32 %v258, %v265
        %271 = vset.pattern.permute.xlu0 4
        %272 = vperm.xlu0 %271, %v211
        %v273 = vpop.permute.xlu0 %272
        %275 = vset.pattern.permute.xlu0 4
        %276 = vperm.xlu0 %275, %v212
        %v277 = vpop.permute.xlu0 %276
        %v279 = vadd.f32 %v267, %v273
        %v280 = vadd.f32 %v268, %v273
        %v281 = vadd.f32 %v269, %v277
        %v282 = vadd.f32 %v270, %v277
        %v283 = vtanh.pop %v279
        %v284 = vtanh.pop %v280
        %v285 = vtanh.pop %v281
        %v286 = vtanh.pop %v282
        %287 = vset.pattern.permute.xlu0 5
        %288 = vperm.xlu0 %287, %v211
        %v289 = vpop.permute.xlu0 %288
        %291 = vset.pattern.permute.xlu0 5
        %292 = vperm.xlu0 %291, %v212
        %v293 = vpop.permute.xlu0 %292
        %v295 = vmul.f32 %v283, %v289
        %v296 = vmul.f32 %v284, %v289
        %v297 = vmul.f32 %v285, %v293
        %v298 = vmul.f32 %v286, %v293
        %v299 = vadd.f32 %v279, %v295
        %v300 = vadd.f32 %v280, %v296
        %v301 = vadd.f32 %v281, %v297
        %v302 = vadd.f32 %v282, %v298
        %303 = vset.pattern.permute.xlu0 6
        %304 = vperm.xlu0 %303, %v211
        %v305 = vpop.permute.xlu0 %304
        %307 = vset.pattern.permute.xlu0 6
        %308 = vperm.xlu0 %307, %v212
        %v309 = vpop.permute.xlu0 %308
        %v311 = vmul.f32 %v299, %v305
        %v312 = vmul.f32 %v300, %v305
        %v313 = vmul.f32 %v301, %v309
        %v314 = vmul.f32 %v302, %v309
        %315 = vset.pattern.permute.xlu0 7
        %316 = vperm.xlu0 %315, %v211
        %v317 = vpop.permute.xlu0 %316
        %319 = vset.pattern.permute.xlu0 7
        %320 = vperm.xlu0 %319, %v212
        %v321 = vpop.permute.xlu0 %320
        %v323 = vadd.f32 %v311, %v317
        %v324 = vadd.f32 %v312, %v317
        %v325 = vadd.f32 %v313, %v321
        %v326 = vadd.f32 %v314, %v321
        %v327 = vtanh.pop %v323
        %v328 = vtanh.pop %v324
        %v329 = vtanh.pop %v325
        %v330 = vtanh.pop %v326
        %331 = vset.pattern.permute.xlu0 8
        %332 = vperm.xlu0 %331, %v211
        %v333 = vpop.permute.xlu0 %332
        %335 = vset.pattern.permute.xlu0 8
        %336 = vperm.xlu0 %335, %v212
        %v337 = vpop.permute.xlu0 %336
        %v339 = vmul.f32 %v327, %v333
        %v340 = vmul.f32 %v328, %v333
        %v341 = vmul.f32 %v329, %v337
        %v342 = vmul.f32 %v330, %v337
        %v343 = vadd.f32 %v323, %v339
        %v344 = vadd.f32 %v324, %v340
        %v345 = vadd.f32 %v325, %v341
        %v346 = vadd.f32 %v326, %v342
        %347 = vset.pattern.permute.xlu0 9
        %348 = vperm.xlu0 %347, %v211
        %v349 = vpop.permute.xlu0 %348
        %351 = vset.pattern.permute.xlu0 9
        %352 = vperm.xlu0 %351, %v212
        %v353 = vpop.permute.xlu0 %352
        %v355 = vmul.f32 %v343, %v349
        %v356 = vmul.f32 %v344, %v349
        %v357 = vmul.f32 %v345, %v353
        %v358 = vmul.f32 %v346, %v353
        %359 = vset.pattern.permute.xlu0 10
        %360 = vperm.xlu0 %359, %v211
        %v361 = vpop.permute.xlu0 %360
        %363 = vset.pattern.permute.xlu0 10
        %364 = vperm.xlu0 %363, %v212
        %v365 = vpop.permute.xlu0 %364
        %v367 = vadd.f32 %v355, %v361
        %v368 = vadd.f32 %v356, %v361
        %v369 = vadd.f32 %v357, %v365
        %v370 = vadd.f32 %v358, %v365
        %v371 = vxor.u32 %v367, 2147483648
        %v372 = vxor.u32 %v368, 2147483648
        %v373 = vxor.u32 %v369, 2147483648
        %v374 = vxor.u32 %v370, 2147483648
        %v375 = vmul.f32 %v371, 1.442695
        %v376 = vpow.pop %v375
        %v377 = vmul.f32 %v372, 1.442695
        %v378 = vpow.pop %v377
        %v379 = vmul.f32 %v373, 1.442695
        %v380 = vpow.pop %v379
        %v381 = vmul.f32 %v374, 1.442695
        %v382 = vpow.pop %v381
        %v383 = vadd.f32 %v376, 1.0
        %v384 = vadd.f32 %v378, 1.0
        %v385 = vadd.f32 %v380, 1.0
        %v386 = vadd.f32 %v382, 1.0
        %v387 = vrcp.pop %v383
        %v388 = vmul.f32 1.0, %v387
        %v389 = vrcp.pop %v384
        %v390 = vmul.f32 1.0, %v389
        %v391 = vrcp.pop %v385
        %v392 = vmul.f32 1.0, %v391
        %v393 = vrcp.pop %v386
        %v394 = vmul.f32 1.0, %v393
        %395 = vst [vmem:[%s196] sm:$0xff] %v388
        %396 = vst [vmem:[%s196 + $0x8] sm:$0xff] %v390
        %397 = vst [vmem:[%s196 + $0x10] sm:$0xff] %v392
        %398 = vst [vmem:[%s196 + $0x18] sm:$0xff] %v394
        %s399 = sand.u32 %s95, 1
        %s400 = scalar_lea.sflag [#allocation4], %s399
        %s401 = sand.u32 %s95, 1
        %s402 = smul.addr %s401, 32
        %s403 = scalar_lea.vmem [#allocation5], %s402
        // Predicated region
        $region33: #{tpu_custom_call.1} parent=27 // pred_check
          %p404 = pneg %p105
        $region34: #{tpu_custom_call.1} parent=27 // pred_check_branch
          %406 = sbr.rel (%p404) target = $region36
        $region35: #{tpu_custom_call.1} parent=27 // pred_region
          %s407 = smul.u32 2, %s23
          %s408 = smul.u32 2, %s24
          %s410 = ssub.s32 512, 512
          %411 = vsyncadd %s400, %s410
          %s412 = smul.addr %s407, 2
          %s413 = sadd.s32 %s408, %s412
          %s414 = smul.addr %s413, 128
          %s415 = scalar_lea.hbm %s2, %s414
          %s416 = sshll.u32 %s403, 4
          %s417 = int_to_ptr.vmem [resolvable:$true] %s416
          %422 = dma.vmem_to_hbm [thread:$0]  %s417, 512, %s415, %s400, 256, 256, 16
        $region36: #{tpu_custom_call.1} parent=27 // pred_fallthru
          _
      $region28: #{tpu_custom_call.1} parent=5 // pred_fallthru
        _
      %p423 = scmp.le.s32.totalorder 2, %s14
      // Predicated region
      $region37: #{tpu_custom_call.1} parent=5 // pred_check
        %p424 = pneg %p423
      $region38: #{tpu_custom_call.1} parent=5 // pred_check_branch
        %426 = sbr.rel (%p424) target = $region40
      $region39: #{tpu_custom_call.1} parent=5 // pred_region
        %s427 = ssub.s32 %s14, 2
        // Predicated region
        $region41: #{tpu_custom_call.1} parent=39 // pred_check
          %p428 = pneg %p111
        $region42: #{tpu_custom_call.1} parent=39 // pred_check_branch
          %430 = sbr.rel (%p428) target = $region44
        $region43: #{tpu_custom_call.1} parent=39 // pred_region
          %s431 = sand.u32 %s96, 1
          %s432 = scalar_lea.sflag [#allocation4], %s431
          %s433 = sand.u32 %s96, 1
          %s434 = smul.addr %s433, 32
          %s435 = scalar_lea.vmem [#allocation5], %s434
          %436 = dma.done %s432, 512
        $region44: #{tpu_custom_call.1} parent=39 // pred_fallthru
          _
      $region40: #{tpu_custom_call.1} parent=5 // pred_fallthru
        _
    $region6: #{tpu_custom_call.1} parent=1 // loop_footer
      %s18 = sadd.s32 1, %s14
    $region7: #{tpu_custom_call.1} parent=1 // loop_footer_branch
      %13 = sbr.rel target = $region3
    $region8: #{tpu_custom_call.1} parent=1 // loop_exit
      _
    %437 = vsyncpa [#allocation3], 1
    %s438 = scalar_lea.sflag [#allocation3], 1
    %439 = vsyncpa %s438, 1
    %440 = vsyncpa [#allocation4], 1
    %s441 = scalar_lea.sflag [#allocation4], 1
    %442 = vsyncpa %s441, 1

</llo_original>
